<compile_context>
chip_gen: v7x
topology: tpu7x:2x2x1
jax: 0.10.0
libtpu: 0.0.40
codegen_flags: <defaults>
</compile_context>

<pallas_src>
import functools

import jax
import jax.numpy as jnp
from jax.experimental import pallas as pl
from jax.experimental.pallas import tpu as pltpu

_MIN_VMEM_LIMIT = 16 * 1024 * 1024
_SLACK_BYTES = 2 * 1024 * 1024


def _rmsnorm_kernel(x_ref, w_ref, o_ref, *, eps: float):
    # x_ref: (block_rows, dim); w_ref: (1, dim); o_ref: (block_rows, dim)
    x = x_ref[...].astype(jnp.float32)                      # x.float()
    dim = x.shape[-1]
    # sum * (1/dim): constant multiply folded next to the XLU reduction
    # instead of a per-row divide.
    ms = jnp.sum(x * x, axis=-1, keepdims=True) * (1.0 / dim)
    inv = jax.lax.rsqrt(ms + eps)                            # EUP slot
    normed = (x * inv).astype(x_ref.dtype)                   # .type_as(x)
    # weight * normed with the caller-chosen output dtype.
    o_ref[...] = (w_ref[...] * normed).astype(o_ref.dtype)


def _sublane_packing(itemsize: int) -> int:
    # rows per vreg: 32-bit -> 8, 16-bit -> 16, 8-bit -> 32
    return {4: 8, 2: 16, 1: 32}.get(itemsize, 8)


def _round_up(n: int, m: int) -> int:
    return ((n + m - 1) // m) * m


def _vmem_capacity_bytes() -> int:
    try:
        return int(pltpu.get_tpu_info().vmem_capacity_bytes)
    except Exception:
        # Conservative fallback = smallest current per-TC VMEM (v7x).
        return 64 * 1024 * 1024


def _per_row_bytes(dim: int, in_b: int, out_b: int) -> int:
    # Double-buffered input + output blocks + ~3 f32 body temporaries
    # (upcast x, x*x / normed intermediates) per element.
    return dim * (2 * in_b + 2 * out_b + 3 * 4)


def _choose_block_rows(rows: int, dim: int, in_dtype, out_dtype,
                       budget_bytes: int) -> int:
    """Largest aligned row tile whose pipelined working set fits the budget."""
    in_b = jnp.dtype(in_dtype).itemsize
    out_b = jnp.dtype(out_dtype).itemsize
    align = max(_sublane_packing(in_b), _sublane_packing(out_b))
    per_row = _per_row_bytes(dim, in_b, out_b)

    # Bytes-based cap (no arbitrary row cap).
    br = max(align, (budget_bytes // per_row) // align * align)
    br = min(br, _round_up(rows, align))     # don't over-allocate for small inputs

    # Ensure the grid has >= 2 (prefer 4) steps when the blocks stay multi-MiB,
    # so the "parallel" grid axis shards across both v7x TensorCores.
    for parts, min_block_bytes in ((4, 2 << 20), (2, 1 << 20)):
        part_rows = _round_up(-(-rows // parts), align)
        if part_rows < rows and part_rows * dim * in_b >= min_block_bytes:
            br = min(br, part_rows)
            break

    return max(br, align)


def rmsnorm(x: jax.Array, weight: jax.Array, eps: float = 1e-6, *,
            promote_output: bool = True,
            vmem_budget_bytes: int | None = None) -> jax.Array:
    """RMSNorm over the last axis of x, matching the PyTorch module.

    promote_output=True (default) keeps PyTorch promotion semantics
    (e.g. bf16 x, f32 weight -> f32 output). promote_output=False is an
    opt-in bandwidth fast path that keeps the output in x.dtype.
    """
    orig_shape = x.shape
    dim = orig_shape[-1]
    assert weight.shape == (dim,)

    x2d = x.reshape(-1, dim)
    rows = x2d.shape[0]

    out_dtype = (jnp.promote_types(weight.dtype, x.dtype)
                 if promote_output else x.dtype)
    w2d = weight.reshape(1, dim)
    if not promote_output:
        w2d = w2d.astype(out_dtype)

    # Chip-aware VMEM sizing.
    vmem_cap = _vmem_capacity_bytes()
    limit_cap = (vmem_cap * 3) // 4          # <= ~75% physical (~48 MiB on v7x)
    if vmem_budget_bytes is None:
        vmem_budget_bytes = (vmem_cap * 3) // 8   # ~37.5% of capacity

    in_b = jnp.dtype(x.dtype).itemsize
    out_b = jnp.dtype(out_dtype).itemsize
    w_b = jnp.dtype(w2d.dtype).itemsize
    per_row = _per_row_bytes(dim, in_b, out_b)
    align = max(_sublane_packing(in_b), _sublane_packing(out_b))

    # Pathological regime: even the minimum row tile does not fit VMEM.
    # TODO(synk): dim-chunked (two-pass) Pallas kernel for huge `dim`; fall
    # back to plain JAX there instead of failing to compile.
    if align * per_row + 2 * dim * w_b + _SLACK_BYTES > limit_cap:
        xf = x.astype(jnp.float32)
        inv = jax.lax.rsqrt(jnp.mean(xf * xf, axis=-1, keepdims=True) + eps)
        normed = (xf * inv).astype(x.dtype)
        return (weight * normed).astype(out_dtype)

    block_rows = _choose_block_rows(rows, dim, x.dtype, out_dtype,
                                    vmem_budget_bytes)
    grid = (pl.cdiv(rows, block_rows),)

    # One consistent VMEM model (same per-row accounting as block sizing).
    working_set = block_rows * per_row + 2 * dim * w_b
    vmem_limit = min(limit_cap, max(_MIN_VMEM_LIMIT, working_set + _SLACK_BYTES))

    kernel = functools.partial(_rmsnorm_kernel, eps=eps)
    out = pl.pallas_call(
        kernel,
        out_shape=jax.ShapeDtypeStruct((rows, dim), out_dtype),
        grid_spec=pltpu.PrefetchScalarGridSpec(
            num_scalar_prefetch=0,
            grid=grid,
            in_specs=[
                pl.BlockSpec((block_rows, dim), lambda i: (i, 0)),
                pl.BlockSpec((1, dim), lambda i: (0, 0)),
            ],
            out_specs=pl.BlockSpec((block_rows, dim), lambda i: (i, 0)),
        ),
        compiler_params=pltpu.CompilerParams(
            dimension_semantics=("parallel",),
            vmem_limit_bytes=int(vmem_limit)),
    )(x2d, w2d)

    return out.reshape(orig_shape[:-1] + (dim,))


def rmsnorm_ref(x: jax.Array, weight: jax.Array, eps: float = 1e-6) -> jax.Array:
    xf = x.astype(jnp.float32)
    inv = jax.lax.rsqrt(jnp.mean(xf * xf, axis=-1, keepdims=True) + eps)
    normed = (xf * inv).astype(x.dtype)
    return weight * normed


if __name__ == "__main__":
    key = jax.random.PRNGKey(0)
    k0, k1, k2 = jax.random.split(key, 3)

    # Lane-dense hidden dim (multiple of 128) at small scale.
    batch, seq, dim = 2, 8, 128
    x = jax.random.normal(k0, (batch, seq, dim), dtype=jnp.float32)
    # Parameter init matches nn.Parameter(torch.ones(dim)).
    weight = jnp.ones((dim,), dtype=jnp.float32)

    out = jax.block_until_ready(rmsnorm(x, weight, eps=1e-6))
    ref = rmsnorm_ref(x, weight, eps=1e-6)
    assert out.shape == ref.shape and out.dtype == ref.dtype
    assert jnp.allclose(out, ref, atol=1e-5, rtol=1e-5)

    # Ragged row count (15 rows): exercises the masked partial tail block.
    x2 = jax.random.normal(k1, (3, 5, dim), dtype=jnp.float32)
    out2 = jax.block_until_ready(rmsnorm(x2, weight, eps=1e-6))
    ref2 = rmsnorm_ref(x2, weight, eps=1e-6)
    assert out2.shape == ref2.shape and out2.dtype == ref2.dtype
    assert jnp.allclose(out2, ref2, atol=1e-5, rtol=1e-5)

    # bf16 activations with the opt-in same-dtype output fast path.
    x3 = jax.random.normal(k2, (batch, seq, dim), dtype=jnp.bfloat16)
    out3 = jax.block_until_ready(rmsnorm(x3, weight, eps=1e-6,
                                         promote_output=False))
    ref3 = (weight.astype(jnp.bfloat16)
            * rmsnorm_ref(x3, weight.astype(jnp.bfloat16), eps=1e-6))
    assert out3.shape == ref3.shape and out3.dtype == jnp.bfloat16
    assert jnp.allclose(out3.astype(jnp.float32), ref3.astype(jnp.float32),
                        atol=2e-2, rtol=2e-2)

    print("KERNEL_OK")
</pallas_src>

<mosaic_0001>
module attributes {stable_mosaic.version = 11 : i64} {
  func.func @_rmsnorm_kernel(%arg0: i32, %arg1: memref<16x128xf32, #tpu.memory_space<vmem>>, %arg2: memref<1x128xf32, #tpu.memory_space<vmem>>, %arg3: memref<16x128xf32, #tpu.memory_space<vmem>>) attributes {dimension_semantics = [#tpu.dimension_semantics<parallel>], iteration_bounds = array<i64: 1>, scalar_prefetch = 0 : i64, scratch_operands = 0 : i64, tpu.core_type = #tpu.core_type<tc>, window_params = [{transform_indices = @transform_0, window_bounds = array<i64: 16, 128>}, {pipeline_mode = #tpu.pipeline_mode<synchronous>, transform_indices = @transform_1, window_bounds = array<i64: 1, 128>}, {transform_indices = @transform_2, window_bounds = array<i64: 16, 128>}]} {
    %c0 = arith.constant 0 : index
    %c0_0 = arith.constant 0 : index
    %0 = vector.load %arg1[%c0, %c0_0] : memref<16x128xf32, #tpu.memory_space<vmem>>, vector<16x128xf32>
    %1 = arith.mulf %0, %0 : vector<16x128xf32>
    %cst = arith.constant dense<0.000000e+00> : vector<16xf32>
    %2 = vector.multi_reduction <add>, %1, %cst [1] : vector<16x128xf32> to vector<16xf32>
    %3 = vector.shape_cast %2 : vector<16xf32> to vector<16x1xf32>
    %cst_1 = arith.constant 7.812500e-03 : f32
    %4 = vector.broadcast %cst_1 : f32 to vector<16x1xf32>
    %5 = arith.mulf %3, %4 : vector<16x1xf32>
    %cst_2 = arith.constant 9.99999997E-7 : f32
    %6 = vector.broadcast %cst_2 : f32 to vector<16x1xf32>
    %7 = arith.addf %5, %6 : vector<16x1xf32>
    %8 = math.rsqrt %7 : vector<16x1xf32>
    %9 = vector.broadcast %8 : vector<16x1xf32> to vector<16x128xf32>
    %10 = arith.mulf %0, %9 : vector<16x128xf32>
    %c0_3 = arith.constant 0 : index
    %c0_4 = arith.constant 0 : index
    %11 = vector.load %arg2[%c0_3, %c0_4] : memref<1x128xf32, #tpu.memory_space<vmem>>, vector<1x128xf32>
    %12 = vector.broadcast %11 : vector<1x128xf32> to vector<16x128xf32>
    %13 = arith.mulf %12, %10 : vector<16x128xf32>
    %c0_5 = arith.constant 0 : index
    %c0_6 = arith.constant 0 : index
    %14 = vector.load %arg3[%c0_5, %c0_6] : memref<16x128xf32, #tpu.memory_space<vmem>>, vector<16x128xf32>
    tpu.vector_store %arg3[%c0_5, %c0_6], %13 {strides = array<i32>} : memref<16x128xf32, #tpu.memory_space<vmem>>, vector<16x128xf32>,
    return
  }
  func.func @transform_0(%arg0: i32) -> (i32, i32) {
    %c0_i32 = arith.constant 0 : i32
    %c0_i32_0 = arith.constant 0 : i32
    return %arg0, %c0_i32 : i32, i32
  }
  func.func @transform_1(%arg0: i32) -> (i32, i32) {
    %c0_i32 = arith.constant 0 : i32
    %c0_i32_0 = arith.constant 0 : i32
    %c0_i32_1 = arith.constant 0 : i32
    return %c0_i32, %c0_i32_0 : i32, i32
  }
  func.func @transform_2(%arg0: i32) -> (i32, i32) {
    %c0_i32 = arith.constant 0 : i32
    %c0_i32_0 = arith.constant 0 : i32
    return %arg0, %c0_i32 : i32, i32
  }
}

</mosaic_0001>

<llo_original>
// kernel: tpu_custom_call.1
$region0: #{tpu_custom_call.1}
  #allocation0 [shape = 'u32[]', space=smem, size = 0x4, offset = 0x4, fixed_abs, tag = 'smem constant byte address 0x4 - core index']
  #allocation1 [shape = 'u32[144,128]{1,0:T(1,128)}', space=vmem, size = 0x12000, scoped, tag = 'internal scratch']
  %s0 = inlined_call_operand.hbm [shape: f32[16,128], index: 0, kind: input, shape index: {}]
  %s1 = inlined_call_operand.vmem [shape: f32[1,128], index: 1, kind: input, shape index: {}]
  %s2 = inlined_call_operand.hbm [shape: f32[16,128], index: 2, kind: output, shape index: {}]
  %s3 = sld [smem:[#allocation0]]
  $region22: #{tpu_custom_call.1} parent=0
    _
  %s5 = ssub.s32 1, %s3
  %s6 = scalar_select 0, %s5, %s3
  $region1: #{tpu_custom_call.1} parent=0
    #allocation2 [shape = 'u8[8192]{0}', space=vmem, size = 0x2000, scoped, tag = 'input window, operand 0, single buffered']
    #allocation3 [shape = 's32[1]{0}', space=sflag, size = 0x4, scoped, tag = 'scoped memory for tpu_custom_call.1']
    #allocation4 [shape = 's32[1]{0}', space=sflag, size = 0x4, scoped, tag = 'scoped memory for tpu_custom_call.1']
    #allocation5 [shape = 'u8[8192]{0}', space=vmem, size = 0x2000, scoped, tag = 'output window, operand 0, single buffered']
    %7 = vsyncpa [#allocation3], 0
    %8 = vsyncpa [#allocation4], 0
    // Predicated region
    $region2: #{tpu_custom_call.1} parent=1 // pred_check
      _
    $region3: #{tpu_custom_call.1} parent=1 // pred_check_branch
      %10 = sbr.rel (0) target = $region5
    $region4: #{tpu_custom_call.1} parent=1 // pred_region
      %s12 = ssub.s32 256, 256
      %13 = vsyncadd [#allocation3], %s12
      %s14 = sshll.u32 [#allocation2], 4
      %s15 = int_to_ptr.vmem [resolvable:$true] %s14
      %20 = dma.hbm_to_vmem [thread:$0]  %s0, 256, %s15, [#allocation3], 128, 128, 8
    $region5: #{tpu_custom_call.1} parent=1 // pred_fallthru
      _
    // Predicated region
    $region6: #{tpu_custom_call.1} parent=1 // pred_check
      _
    $region7: #{tpu_custom_call.1} parent=1 // pred_check_branch
      %22 = sbr.rel (0) target = $region9
    $region8: #{tpu_custom_call.1} parent=1 // pred_region
      _
    $region9: #{tpu_custom_call.1} parent=1 // pred_fallthru
      _
    // Predicated region
    $region10: #{tpu_custom_call.1} parent=1 // pred_check
      _
    $region11: #{tpu_custom_call.1} parent=1 // pred_check_branch
      %24 = sbr.rel (0) target = $region13
    $region12: #{tpu_custom_call.1} parent=1 // pred_region
      %25 = dma.done [#allocation3], 256
    $region13: #{tpu_custom_call.1} parent=1 // pred_fallthru
      _
    %v26 = vld [vmem:[#allocation2] sm:$0xff]
    %v27 = vld [vmem:[#allocation2 + $0x8] sm:$0xff]
    %v28 = vmul.f32 %v26, %v26
    %v29 = vmul.f32 %v27, %v27
    %30 = vadd.xlane.f32.xlu0 %v28
    %v31 = vpop.xlane.xlu0 %30
    %32 = vadd.xlane.f32.xlu0 %v29
    %v33 = vpop.xlane.xlu0 %32
    %v34 = vmul.f32 %v31, 0.0078125
    %v35 = vmul.f32 %v33, 0.0078125
    %v36 = vadd.f32 %v34, 1e-06
    %v37 = vadd.f32 %v35, 1e-06
    %v38 = vrsqrt.pop %v36
    %v39 = vrsqrt.pop %v37
    %v40 = vmul.f32 %v26, %v38
    %v41 = vmul.f32 %v27, %v39
    %v42 = vld [vmem:[%s1] sm:$0x1]
    %v44 = vlaneseq
    %v45 = vshrl.u32 %v44, 7
    %v46 = vsub.s32 0, %v45
    %v47 = vrot.slane %v42, %v46
    %v49 = vmul.f32 %v47, %v40
    %v50 = vmul.f32 %v47, %v41
    %51 = vst [vmem:[#allocation5] sm:$0xff] %v49
    %52 = vst [vmem:[#allocation5 + $0x8] sm:$0xff] %v50
    // Predicated region
    $region14: #{tpu_custom_call.1} parent=1 // pred_check
      _
    $region15: #{tpu_custom_call.1} parent=1 // pred_check_branch
      %54 = sbr.rel (0) target = $region17
    $region16: #{tpu_custom_call.1} parent=1 // pred_region
      %s56 = ssub.s32 256, 256
      %57 = vsyncadd [#allocation4], %s56
      %s58 = sshll.u32 [#allocation5], 4
      %s59 = int_to_ptr.vmem [resolvable:$true] %s58
      %64 = dma.vmem_to_hbm [thread:$0]  %s59, 256, %s2, [#allocation4], 128, 128, 8
    $region17: #{tpu_custom_call.1} parent=1 // pred_fallthru
      _
    // Predicated region
    $region18: #{tpu_custom_call.1} parent=1 // pred_check
      _
    $region19: #{tpu_custom_call.1} parent=1 // pred_check_branch
      %66 = sbr.rel (0) target = $region21
    $region20: #{tpu_custom_call.1} parent=1 // pred_region
      %67 = dma.done [#allocation4], 256
    $region21: #{tpu_custom_call.1} parent=1 // pred_fallthru
      _
    %68 = vsyncpa [#allocation3], 1
    %69 = vsyncpa [#allocation4], 1

</llo_original>
